<compile_context>
chip_gen: v6e
topology: v6e:2x2x1
jax: 0.10.0
libtpu: 0.0.40
codegen_flags: <defaults>
</compile_context>

<pallas_src>
import jax
import jax.numpy as jnp
from jax.experimental import pallas as pl
from jax.experimental.pallas import tpu as pltpu

N_OUT = 12              # 3 features, concatenated 4x
MAX_TILE_B = 4096       # rows (batch elems) per grid step; multiple of 8
MIN_TILE_B = 8          # sublane granularity
TARGET_STEPS = 8        # aim for ~8 pipelined grid steps


def _cdiv(a, b):
    return -(-a // b)


def _round_up(a, m):
    return _cdiv(a, m) * m


def _model_kernel(x_ref, w_ref, b_ref, o_ref):
    # x_ref: (TILE_B, 1) VMEM   -- batch on sublanes
    # w_ref, b_ref: (1, 12) VMEM -- Linear(1,3) params pre-tiled x4
    # o_ref: (TILE_B, 12) VMEM  -- final output layout, written directly
    y = x_ref[...] * w_ref[...] + b_ref[...]   # (TILE_B, 12) broadcast FMA (VPU)
    o_ref[...] = y * y                         # square; relu elided (y*y >= 0)


def _build_pallas_fn(B_pad, tile_b):
    steps = B_pad // tile_b
    return pl.pallas_call(
        _model_kernel,
        out_shape=jax.ShapeDtypeStruct((B_pad, N_OUT), jnp.float32),
        grid=(steps,),
        in_specs=[
            pl.BlockSpec((tile_b, 1), lambda i: (i, 0)),
            pl.BlockSpec((1, N_OUT), lambda i: (0, 0)),
            pl.BlockSpec((1, N_OUT), lambda i: (0, 0)),
        ],
        out_specs=pl.BlockSpec((tile_b, N_OUT), lambda i: (i, 0)),
        compiler_params=pltpu.CompilerParams(
            dimension_semantics=("parallel",),
            vmem_limit_bytes=32 * 1024 * 1024,
        ),
    )


@jax.jit
def model_forward(x, weight, bias):
    """x: (B, 1) f32, weight: (3, 1) f32, bias: (3,) f32 -> (B, 12) f32."""
    B = x.shape[0]

    # --- grid / tile selection (static, shape-dependent) ------------------
    B8 = _round_up(B, MIN_TILE_B)                         # sublane granularity
    tile_b = min(MAX_TILE_B,
                 max(MIN_TILE_B, _round_up(_cdiv(B8, TARGET_STEPS), MIN_TILE_B)))
    steps = _cdiv(B8, tile_b)
    if steps < 2:
        steps = 2                  # never a single step: keep DMA pipelined
    if steps % 2:
        steps += 1                 # even step count: both v7x TCs get work
    B_pad = steps * tile_b         # pads at most one tile + 7 rows

    # --- input / param plumbing -------------------------------------------
    x_col = x.reshape(B, 1).astype(jnp.float32)
    if B_pad != B:
        x_col = jnp.pad(x_col, ((0, B_pad - B), (0, 0)))
    w12 = jnp.tile(weight.reshape(1, 3).astype(jnp.float32), (1, 4))   # (1,12)
    b12 = jnp.tile(bias.reshape(1, 3).astype(jnp.float32), (1, 4))     # (1,12)

    out = _build_pallas_fn(B_pad, tile_b)(x_col, w12, b12)   # (B_pad, 12)
    return out[:B] if B_pad != B else out


def reference_forward(x, weight, bias):
    y = x @ weight.T + bias
    y = y * y
    y = jnp.concatenate([y, y, y, y], axis=-1)
    return jnp.maximum(y, 0.0)


if __name__ == "__main__":
    key = jax.random.PRNGKey(0)
    kx, kw, kb, kx2 = jax.random.split(key, 4)

    # Deterministic init mimicking nn.Linear(1, 3): U(-1/sqrt(1), 1/sqrt(1))
    bound = 1.0
    weight = jax.random.uniform(kw, (3, 1), dtype=jnp.float32,
                                minval=-bound, maxval=bound)
    bias = jax.random.uniform(kb, (3,), dtype=jnp.float32,
                              minval=-bound, maxval=bound)

    # Small shape from the spec: torch.randn(2, 1)
    x = jax.random.normal(kx, (2, 1), dtype=jnp.float32)
    out = jax.block_until_ready(model_forward(x, weight, bias))
    ref = reference_forward(x, weight, bias)
    assert out.shape == (2, 12), out.shape
    assert jnp.allclose(out, ref, atol=1e-5, rtol=1e-5), "mismatch vs ref (B=2)"

    # Exercise the padded / multi-step grid path (B not a multiple of 8).
    x_big = jax.random.normal(kx2, (333, 1), dtype=jnp.float32)
    out_big = jax.block_until_ready(model_forward(x_big, weight, bias))
    ref_big = reference_forward(x_big, weight, bias)
    assert out_big.shape == (333, 12), out_big.shape
    assert jnp.allclose(out_big, ref_big, atol=1e-5, rtol=1e-5), \
        "mismatch vs ref (B=333)"

    print("KERNEL_OK")
</pallas_src>

<mosaic_0001>
module attributes {stable_mosaic.version = 11 : i64} {
  func.func @_model_kernel(%arg0: i32, %arg1: memref<8x1xf32, #tpu.memory_space<vmem>>, %arg2: memref<1x12xf32, #tpu.memory_space<vmem>>, %arg3: memref<1x12xf32, #tpu.memory_space<vmem>>, %arg4: memref<8x12xf32, #tpu.memory_space<vmem>>) attributes {dimension_semantics = [#tpu.dimension_semantics<parallel>], iteration_bounds = array<i64: 2>, scalar_prefetch = 0 : i64, scratch_operands = 0 : i64, tpu.core_type = #tpu.core_type<tc>, window_params = [{transform_indices = @transform_0, window_bounds = array<i64: 8, 1>}, {pipeline_mode = #tpu.pipeline_mode<synchronous>, transform_indices = @transform_1, window_bounds = array<i64: 1, 12>}, {pipeline_mode = #tpu.pipeline_mode<synchronous>, transform_indices = @transform_2, window_bounds = array<i64: 1, 12>}, {transform_indices = @transform_3, window_bounds = array<i64: 8, 12>}]} {
    %c0 = arith.constant 0 : index
    %c0_0 = arith.constant 0 : index
    %0 = vector.load %arg1[%c0, %c0_0] : memref<8x1xf32, #tpu.memory_space<vmem>>, vector<8x1xf32>
    %c0_1 = arith.constant 0 : index
    %c0_2 = arith.constant 0 : index
    %1 = vector.load %arg2[%c0_1, %c0_2] : memref<1x12xf32, #tpu.memory_space<vmem>>, vector<1x12xf32>
    %2 = vector.broadcast %0 : vector<8x1xf32> to vector<8x12xf32>
    %3 = vector.broadcast %1 : vector<1x12xf32> to vector<8x12xf32>
    %4 = arith.mulf %2, %3 : vector<8x12xf32>
    %c0_3 = arith.constant 0 : index
    %c0_4 = arith.constant 0 : index
    %5 = vector.load %arg3[%c0_3, %c0_4] : memref<1x12xf32, #tpu.memory_space<vmem>>, vector<1x12xf32>
    %6 = vector.broadcast %5 : vector<1x12xf32> to vector<8x12xf32>
    %7 = arith.addf %4, %6 : vector<8x12xf32>
    %8 = arith.mulf %7, %7 : vector<8x12xf32>
    %c0_5 = arith.constant 0 : index
    %c0_6 = arith.constant 0 : index
    %9 = vector.load %arg4[%c0_5, %c0_6] : memref<8x12xf32, #tpu.memory_space<vmem>>, vector<8x12xf32>
    tpu.vector_store %arg4[%c0_5, %c0_6], %8 {strides = array<i32>} : memref<8x12xf32, #tpu.memory_space<vmem>>, vector<8x12xf32>,
    return
  }
  func.func @transform_0(%arg0: i32) -> (i32, i32) {
    %c0_i32 = arith.constant 0 : i32
    %c0_i32_0 = arith.constant 0 : i32
    return %arg0, %c0_i32 : i32, i32
  }
  func.func @transform_1(%arg0: i32) -> (i32, i32) {
    %c0_i32 = arith.constant 0 : i32
    %c0_i32_0 = arith.constant 0 : i32
    %c0_i32_1 = arith.constant 0 : i32
    return %c0_i32, %c0_i32_0 : i32, i32
  }
  func.func @transform_2(%arg0: i32) -> (i32, i32) {
    %c0_i32 = arith.constant 0 : i32
    %c0_i32_0 = arith.constant 0 : i32
    %c0_i32_1 = arith.constant 0 : i32
    return %c0_i32, %c0_i32_0 : i32, i32
  }
  func.func @transform_3(%arg0: i32) -> (i32, i32) {
    %c0_i32 = arith.constant 0 : i32
    %c0_i32_0 = arith.constant 0 : i32
    return %arg0, %c0_i32 : i32, i32
  }
}

</mosaic_0001>

<llo_original>
// kernel: model_forward.1
$region0: #{model_forward.1}
  #allocation0 [shape = 'u32[]', space=smem, size = 0x4, offset = 0x4, fixed_abs, tag = 'smem constant byte address 0x4 - core index']
  #allocation1 [shape = 'u32[144,128]{1,0:T(1,128)}', space=vmem, size = 0x12000, scoped, tag = 'internal scratch']
  %s0 = inlined_call_operand.vmem [shape: f32[16,1], index: 0, kind: input, shape index: {}]
  %s1 = inlined_call_operand.vmem [shape: f32[1,12], index: 1, kind: input, shape index: {}]
  %s2 = inlined_call_operand.vmem [shape: f32[1,12], index: 2, kind: input, shape index: {}]
  %s3 = inlined_call_operand.vmem [shape: f32[16,12], index: 3, kind: output, shape index: {}]
  %s4 = sld [smem:[#allocation0]]
  $region45: #{model_forward.1} parent=0
    _
  %s6 = ssub.s32 1, %s4
  %s7 = scalar_select 0, %s6, %s4
  loop: start=0, step=1, limit=4
  $region2: #{model_forward.1} parent=0 // loop_pre_header
    _
  $region3: #{model_forward.1} parent=0 // loop_header
    %s9 = sphi 0, %s13
    %p10 = scmp.ge.s32.totalorder %s9, 4
    %s19 = sphi 0, %s21
    %s22 = sphi 0, %s19
    %s23 = sphi 0, %s22
    %s39 = sphi 0, %s23
    %s43 = sphi 0, %s43
    %s45 = sphi 0, %s43
    %s46 = sphi 0, %s45
    %s60 = sphi 0, %s46
    %s64 = sphi 0, %s64
    %s66 = sphi 0, %s64
    %s67 = sphi 0, %s66
    %s81 = sphi 0, %s67
    %s87 = sphi 0, %s89
    %s90 = sphi 0, %s87
    %s91 = sphi 0, %s90
    %s107 = sphi 0, %s91
  $region4: #{model_forward.1} parent=0 // loop_header_branch
    %12 = sbr.rel (%p10) target = $region8
  $region5: #{model_forward.1} parent=0 // loop_body
    %s14 = ssub.s32 %s9, 1
    %s15 = ssub.s32 %s9, 2
    %s16 = sadd.s32 %s9, 1
    %s17 = ssub.s32 %s9, %s16
    %p18 = scmp.eq.s32.totalorder %s17, 0
    %s20 = sadd.s32 %s19, 1
    %s21 = scalar_select %p18, %s19, %s20
    %p24 = pneg %p18
    %p25 = scmp.eq.s32.totalorder %s9, 1
    %p26 = por %p24, %p25
    %p27 = scmp.ne.s32.totalorder %s19, %s22
    %p28 = scmp.eq.s32.totalorder %s9, 0
    %p29 = por %p27, %p28
    %p30 = scmp.ne.s32.totalorder %s19, %s22
    %p31 = scmp.eq.s32.totalorder %s14, 1
    %p32 = por %p30, %p31
    %p33 = scmp.ne.s32.totalorder %s22, %s23
    %p34 = scmp.eq.s32.totalorder %s14, 0
    %p35 = por %p33, %p34
    %p36 = scmp.ne.s32.totalorder %s22, %s23
    %p37 = scmp.eq.s32.totalorder %s15, 1
    %p38 = por %p36, %p37
    %p40 = scmp.ne.s32.totalorder %s23, %s39
    %p41 = scmp.eq.s32.totalorder %s15, 0
    %p42 = por %p40, %p41
    %s44 = sadd.s32 %s43, 1
    %p47 = scmp.eq.s32.totalorder %s9, 1
    %p48 = scmp.ne.s32.totalorder %s43, %s45
    %p49 = scmp.eq.s32.totalorder %s9, 0
    %p50 = por %p48, %p49
    %p51 = scmp.ne.s32.totalorder %s43, %s45
    %p52 = scmp.eq.s32.totalorder %s14, 1
    %p53 = por %p51, %p52
    %p54 = scmp.ne.s32.totalorder %s45, %s46
    %p55 = scmp.eq.s32.totalorder %s14, 0
    %p56 = por %p54, %p55
    %p57 = scmp.ne.s32.totalorder %s45, %s46
    %p58 = scmp.eq.s32.totalorder %s15, 1
    %p59 = por %p57, %p58
    %p61 = scmp.ne.s32.totalorder %s46, %s60
    %p62 = scmp.eq.s32.totalorder %s15, 0
    %p63 = por %p61, %p62
    %s65 = sadd.s32 %s64, 1
    %p68 = scmp.eq.s32.totalorder %s9, 1
    %p69 = scmp.ne.s32.totalorder %s64, %s66
    %p70 = scmp.eq.s32.totalorder %s9, 0
    %p71 = por %p69, %p70
    %p72 = scmp.ne.s32.totalorder %s64, %s66
    %p73 = scmp.eq.s32.totalorder %s14, 1
    %p74 = por %p72, %p73
    %p75 = scmp.ne.s32.totalorder %s66, %s67
    %p76 = scmp.eq.s32.totalorder %s14, 0
    %p77 = por %p75, %p76
    %p78 = scmp.ne.s32.totalorder %s66, %s67
    %p79 = scmp.eq.s32.totalorder %s15, 1
    %p80 = por %p78, %p79
    %p82 = scmp.ne.s32.totalorder %s67, %s81
    %p83 = scmp.eq.s32.totalorder %s15, 0
    %p84 = por %p82, %p83
    %s85 = ssub.s32 %s9, %s16
    %p86 = scmp.eq.s32.totalorder %s85, 0
    %s88 = sadd.s32 %s87, 1
    %s89 = scalar_select %p86, %s87, %s88
    %p92 = pneg %p86
    %p93 = scmp.eq.s32.totalorder %s9, 1
    %p94 = por %p92, %p93
    %p95 = scmp.ne.s32.totalorder %s87, %s90
    %p96 = scmp.eq.s32.totalorder %s9, 0
    %p97 = por %p95, %p96
    %p98 = scmp.ne.s32.totalorder %s87, %s90
    %p99 = scmp.eq.s32.totalorder %s14, 1
    %p100 = por %p98, %p99
    %p101 = scmp.ne.s32.totalorder %s90, %s91
    %p102 = scmp.eq.s32.totalorder %s14, 0
    %p103 = por %p101, %p102
    %p104 = scmp.ne.s32.totalorder %s90, %s91
    %p105 = scmp.eq.s32.totalorder %s15, 1
    %p106 = por %p104, %p105
    %p108 = scmp.ne.s32.totalorder %s91, %s107
    %p109 = scmp.eq.s32.totalorder %s15, 0
    %p110 = por %p108, %p109
    %p111 = scmp.le.s32.totalorder 1, %s9
    %p112 = scmp.lt.s32.totalorder %s9, 3
    %p113 = pnand %p111, %p112
    %p114 = pneg %p113
    // Predicated region
    $region9: #{model_forward.1} parent=5 // pred_check
      _
    $region10: #{model_forward.1} parent=5 // pred_check_branch
      %116 = sbr.rel (%p113) target = $region12
    $region11: #{model_forward.1} parent=5 // pred_region
      %s117 = ssub.s32 %s9, 1
      // Predicated region
      $region13: #{model_forward.1} parent=11 // pred_check
        %p118 = pneg %p56
      $region14: #{model_forward.1} parent=11 // pred_check_branch
        %120 = sbr.rel (%p118) target = $region16
      $region15: #{model_forward.1} parent=11 // pred_region
        _
      $region16: #{model_forward.1} parent=11 // pred_fallthru
        _
      // Predicated region
      $region17: #{model_forward.1} parent=11 // pred_check
        %p121 = pneg %p77
      $region18: #{model_forward.1} parent=11 // pred_check_branch
        %123 = sbr.rel (%p121) target = $region20
      $region19: #{model_forward.1} parent=11 // pred_region
        _
      $region20: #{model_forward.1} parent=11 // pred_fallthru
        _
    $region12: #{model_forward.1} parent=5 // pred_fallthru
      _
    %p124 = scmp.lt.s32.totalorder %s9, 2
    // Predicated region
    $region21: #{model_forward.1} parent=5 // pred_check
      %p125 = pneg %p124
    $region22: #{model_forward.1} parent=5 // pred_check_branch
      %127 = sbr.rel (%p125) target = $region24
    $region23: #{model_forward.1} parent=5 // pred_region
      // Predicated region
      $region25: #{model_forward.1} parent=23 // pred_check
        %p128 = pneg %p29
      $region26: #{model_forward.1} parent=23 // pred_check_branch
        %130 = sbr.rel (%p128) target = $region28
      $region27: #{model_forward.1} parent=23 // pred_region
        %p131 = scmp.lt.s32.totalorder %s9, 1
        %s132 = scalar_select %p131, %s9, 1
        %s133 = smul.addr %s132, 8
        %s134 = scalar_lea.vmem %s0, %s133
      $region28: #{model_forward.1} parent=23 // pred_fallthru
        _
    $region24: #{model_forward.1} parent=5 // pred_fallthru
      _
    %p135 = scmp.le.s32.totalorder 1, %s9
    %p136 = scmp.lt.s32.totalorder %s9, 3
    %p137 = pnand %p135, %p136
    %p138 = pneg %p137
    // Predicated region
    $region29: #{model_forward.1} parent=5 // pred_check
      _
    $region30: #{model_forward.1} parent=5 // pred_check_branch
      %140 = sbr.rel (%p137) target = $region32
    $region31: #{model_forward.1} parent=5 // pred_region
      %s141 = ssub.s32 %s9, 1
      %p142 = scmp.lt.s32.totalorder %s14, 1
      %s143 = scalar_select %p142, %s14, 1
      %s144 = smul.addr %s143, 8
      %s145 = scalar_lea.vmem %s0, %s144
      %p146 = pneg %p35
      %p147 = pneg %p32
      %p148 = pneg %p56
      %p149 = pneg %p53
      %p150 = pneg %p77
      %p151 = pneg %p74
      %p152 = pneg %p103
      %p153 = pneg %p100
      %p154 = scmp.lt.s32.totalorder %s14, 1
      %s155 = scalar_select %p154, %s14, 1
      %s156 = smul.addr %s155, 8
      %s157 = scalar_lea.vmem %s3, %s156
      %p158 = scmp.lt.s32.totalorder %s14, 1
      %s159 = scalar_select %p158, %s14, 1
      %s160 = smul.addr %s159, 8
      %s161 = scalar_lea.vmem %s0, %s160
      %p162 = scmp.lt.s32.totalorder %s14, 1
      %s163 = scalar_select %p162, %s14, 1
      %s164 = smul.addr %s163, 8
      %s165 = scalar_lea.vmem %s3, %s164
      %v166 = vld [vmem:[%s161] sm:$0xff]
      %v167 = vld [vmem:[%s1] sm:$0x1]
      %169 = vset.pattern.permute.xlu0 0
      %170 = vperm.xlu0 %169, %v166
      %v171 = vpop.permute.xlu0 %170
      %v174 = vlaneseq
      %v175 = vshrl.u32 %v174, 7
      %v176 = vsub.s32 0, %v175
      %v177 = vrot.slane %v167, %v176
      %v179 = vmul.f32 %v171, %v177
      %v180 = vld [vmem:[%s2] sm:$0x1]
      %v182 = vlaneseq
      %v183 = vshrl.u32 %v182, 7
      %v184 = vsub.s32 0, %v183
      %v185 = vrot.slane %v180, %v184
      %v187 = vadd.f32 %v179, %v185
      %v188 = vmul.f32 %v187, %v187
      %vm189 = vcmask 97280
      %190 = vst.msk [vmem:[%s165] sm:$0xff] %vm189, %v188
      %p191 = scmp.lt.s32.totalorder %s14, 1
      %s192 = scalar_select %p191, %s14, 1
      %s193 = smul.addr %s192, 8
      %s194 = scalar_lea.vmem %s3, %s193
      // Predicated region
      $region33: #{model_forward.1} parent=31 // pred_check
        %p195 = pneg %p100
      $region34: #{model_forward.1} parent=31 // pred_check_branch
        %197 = sbr.rel (%p195) target = $region36
      $region35: #{model_forward.1} parent=31 // pred_region
        _
      $region36: #{model_forward.1} parent=31 // pred_fallthru
        _
    $region32: #{model_forward.1} parent=5 // pred_fallthru
      _
    %p198 = scmp.le.s32.totalorder 2, %s9
    // Predicated region
    $region37: #{model_forward.1} parent=5 // pred_check
      %p199 = pneg %p198
    $region38: #{model_forward.1} parent=5 // pred_check_branch
      %201 = sbr.rel (%p199) target = $region40
    $region39: #{model_forward.1} parent=5 // pred_region
      %s202 = ssub.s32 %s9, 2
      // Predicated region
      $region41: #{model_forward.1} parent=39 // pred_check
        %p203 = pneg %p106
      $region42: #{model_forward.1} parent=39 // pred_check_branch
        %205 = sbr.rel (%p203) target = $region44
      $region43: #{model_forward.1} parent=39 // pred_region
        %p206 = scmp.lt.s32.totalorder %s15, 1
        %s207 = scalar_select %p206, %s15, 1
        %s208 = smul.addr %s207, 8
        %s209 = scalar_lea.vmem %s3, %s208
      $region44: #{model_forward.1} parent=39 // pred_fallthru
        _
    $region40: #{model_forward.1} parent=5 // pred_fallthru
      _
  $region6: #{model_forward.1} parent=0 // loop_footer
    %s13 = sadd.s32 1, %s9
  $region7: #{model_forward.1} parent=0 // loop_footer_branch
    %8 = sbr.rel target = $region3
  $region8: #{model_forward.1} parent=0 // loop_exit
    _

</llo_original>
